<compile_context>
chip_gen: v7x
topology: tpu7x:2x2x1
jax: 0.10.0
libtpu: 0.0.40
codegen_flags: <defaults>
</compile_context>

<pallas_src>
import jax
import jax.numpy as jnp
from jax import lax
from jax.experimental import pallas as pl
from jax.experimental.pallas import tpu as pltpu


_EPS = 1e-5
_LEAK = 0.2


def _pick_tile(total, target, quantum):
    """Largest divisor of `total` that is <= `target` and a multiple of
    `quantum`; falls back to the full dimension (always a legal block)."""
    if total <= target:
        return total
    t = (target // quantum) * quantum
    while t >= quantum:
        if total % t == 0:
            return t
        t -= quantum
    return total


# ----------------------------------------------------------------------------
# Fused path: conv (K-tiled matmul) + InstanceNorm + LeakyReLU in one kernel.
# ----------------------------------------------------------------------------
def _make_fused_kernel(inv_p):
    def _kernel(patches_ref, w_ref, b_ref, o_ref, acc_ref):
        # patches_ref: (1, P, tk) bf16   w_ref: (tk, OCp) bf16   b_ref: (1, OCp) f32
        # o_ref:       (1, P, OCp) f32   acc_ref: (P, OCp) f32 scratch
        k = pl.program_id(1)

        @pl.when(k == 0)
        def _():
            acc_ref[...] = jnp.zeros_like(acc_ref)

        acc_ref[...] += jnp.dot(patches_ref[0], w_ref[...],
                                preferred_element_type=jnp.float32)

        @pl.when(k == pl.num_programs(1) - 1)
        def _():
            y = acc_ref[...] + b_ref[...]                       # (P, OCp)
            mean = jnp.sum(y, axis=0, keepdims=True) * inv_p    # (1, OCp)
            var = jnp.maximum(
                jnp.sum(y * y, axis=0, keepdims=True) * inv_p - mean * mean, 0.0)
            yn = (y - mean) * lax.rsqrt(var + _EPS)
            o_ref[0] = jnp.maximum(yn, _LEAK * yn).astype(o_ref.dtype)

    return _kernel


# ----------------------------------------------------------------------------
# Streaming two-pass fallback (large spatial extents).
# ----------------------------------------------------------------------------
def _conv_stats_kernel(patches_ref, w_ref, b_ref, y_ref, stats_ref, acc_ref):
    # patches_ref: (1, tp, tk) bf16   w_ref: (tk, OCp) bf16   b_ref: (1, OCp) f32
    # y_ref:       (1, tp, OCp) f32   stats_ref: (1, 1, 2, OCp) f32
    # acc_ref:     (tp, OCp) f32 scratch (K-reduction accumulator)
    k = pl.program_id(2)

    @pl.when(k == 0)
    def _():
        acc_ref[...] = jnp.zeros_like(acc_ref)

    acc_ref[...] += jnp.dot(patches_ref[0], w_ref[...],
                            preferred_element_type=jnp.float32)

    @pl.when(k == pl.num_programs(2) - 1)
    def _():
        y = acc_ref[...] + b_ref[...]                           # (tp, OCp)
        y_ref[0] = y.astype(y_ref.dtype)
        s = jnp.sum(y, axis=0, keepdims=True)                   # (1, OCp)
        sq = jnp.sum(y * y, axis=0, keepdims=True)              # (1, OCp)
        stats_ref[0, 0] = jnp.concatenate([s, sq], axis=0)      # (2, OCp)


def _make_norm_kernel(inv_p):
    def _norm_kernel(y_ref, stats_ref, o_ref):
        # y_ref: (1, tp, OCp) f32; stats_ref: (1, 2, OCp) f32 (already reduced)
        st = stats_ref[0]                                       # (2, OCp)
        mean = st[0:1, :] * inv_p                               # (1, OCp)
        var = jnp.maximum(st[1:2, :] * inv_p - mean * mean, 0.0)
        scale = lax.rsqrt(var + _EPS)
        yn = (y_ref[0] - mean) * scale
        o_ref[0] = jnp.maximum(yn, _LEAK * yn).astype(o_ref.dtype)
    return _norm_kernel


# ----------------------------------------------------------------------------
# Wrapper
# ----------------------------------------------------------------------------
def _im2col_reflect(x_nhwc, kh, kw, stride, pad):
    """Reflect-pad and extract conv patches. Returns (N, OH, OW, KH*KW*C)."""
    n, h, w, c = x_nhwc.shape
    xp = jnp.pad(x_nhwc, ((0, 0), (pad, pad), (pad, pad), (0, 0)), mode="reflect")
    oh = (h + 2 * pad - kh) // stride + 1
    ow = (w + 2 * pad - kw) // stride + 1
    cols = []
    for i in range(kh):
        for j in range(kw):
            cols.append(xp[:, i:i + oh * stride:stride, j:j + ow * stride:stride, :])
    patches = jnp.stack(cols, axis=3)                           # (N, OH, OW, KH*KW, C)
    return patches.reshape(n, oh, ow, kh * kw * c), oh, ow


def block_forward(x_nchw, weight, bias, stride, *, force_two_pass=False):
    """x_nchw: (N, IC, H, W); weight: (OC, IC, 4, 4); bias: (OC,) -> (N, OC, OH, OW)."""
    oc, ic, kh, kw = weight.shape
    n = x_nchw.shape[0]

    # NHWC + bf16 *before* patch extraction so the inflated im2col tensor is
    # half the size in HBM and the MXU gets bf16 operands.
    x_nhwc = jnp.transpose(x_nchw, (0, 2, 3, 1)).astype(jnp.bfloat16)
    patches, oh, ow = _im2col_reflect(x_nhwc, kh, kw, stride, pad=1)
    p_dim = oh * ow
    k_dim = kh * kw * ic
    patches = patches.reshape(n, p_dim, k_dim)                  # bf16

    # Weight (OC, IC, KH, KW) -> (KH, KW, IC, OC) -> (K, OC); pad OC to a
    # lane-dense multiple of 128 with zero columns (sliced off at the end).
    ocp = ((oc + 127) // 128) * 128
    w_mat = jnp.transpose(weight, (2, 3, 1, 0)).reshape(k_dim, oc)
    w_mat = jnp.pad(w_mat, ((0, 0), (0, ocp - oc))).astype(jnp.bfloat16)
    b_mat = jnp.pad(bias.reshape(1, oc), ((0, 0), (0, ocp - oc))).astype(jnp.float32)

    tk = _pick_tile(k_dim, 512, 128)
    kt = k_dim // tk
    inv_p = 1.0 / float(p_dim)

    # Fused-path VMEM estimate: f32 accumulator + double-buffered out/patch/wgt.
    fused_bytes = (p_dim * ocp * 4
                   + 2 * p_dim * ocp * 4
                   + 2 * p_dim * tk * 2
                   + 2 * tk * ocp * 2)
    use_fused = (not force_two_pass) and fused_bytes <= 20 * 1024 * 1024

    if use_fused:
        # Single pass: conv + InstanceNorm + LeakyReLU, per-image accumulator.
        out = pl.pallas_call(
            _make_fused_kernel(inv_p),
            out_shape=jax.ShapeDtypeStruct((n, p_dim, ocp), jnp.float32),
            grid_spec=pltpu.PrefetchScalarGridSpec(
                num_scalar_prefetch=0,
                grid=(n, kt),
                in_specs=[
                    pl.BlockSpec((1, p_dim, tk), lambda i, k: (i, 0, k)),
                    pl.BlockSpec((tk, ocp), lambda i, k: (k, 0)),
                    pl.BlockSpec((1, ocp), lambda i, k: (0, 0)),
                ],
                out_specs=pl.BlockSpec((1, p_dim, ocp), lambda i, k: (i, 0, 0)),
                scratch_shapes=[pltpu.VMEM((p_dim, ocp), jnp.float32)],
            ),
            compiler_params=pltpu.CompilerParams(
                dimension_semantics=("parallel", "arbitrary"),
                vmem_limit_bytes=40 * 1024 * 1024),
        )(patches, w_mat, b_mat)
    else:
        # Two-pass streaming path: tile the spatial axis as well.
        tp = _pick_tile(p_dim, 512, 8)
        pt = p_dim // tp

        # Pass 1: tiled conv-as-matmul + streamed per-tile IN statistics.
        y, stats = pl.pallas_call(
            _conv_stats_kernel,
            out_shape=(
                jax.ShapeDtypeStruct((n, p_dim, ocp), jnp.float32),
                jax.ShapeDtypeStruct((n, pt, 2, ocp), jnp.float32),
            ),
            grid_spec=pltpu.PrefetchScalarGridSpec(
                num_scalar_prefetch=0,
                grid=(n, pt, kt),
                in_specs=[
                    pl.BlockSpec((1, tp, tk), lambda i, j, k: (i, j, k)),
                    pl.BlockSpec((tk, ocp), lambda i, j, k: (k, 0)),
                    pl.BlockSpec((1, ocp), lambda i, j, k: (0, 0)),
                ],
                out_specs=[
                    pl.BlockSpec((1, tp, ocp), lambda i, j, k: (i, j, 0)),
                    pl.BlockSpec((1, 1, 2, ocp), lambda i, j, k: (i, j, 0, 0)),
                ],
                scratch_shapes=[pltpu.VMEM((tp, ocp), jnp.float32)],
            ),
            compiler_params=pltpu.CompilerParams(
                dimension_semantics=("parallel", "parallel", "arbitrary")),
        )(patches, w_mat, b_mat)

        # Tiny cross-tile reduction of the stats in XLA: (n, pt, 2, ocp) -> (n, 2, ocp).
        stats_tot = jnp.sum(stats, axis=1)

        # Pass 2: finalize InstanceNorm + LeakyReLU.
        out = pl.pallas_call(
            _make_norm_kernel(inv_p),
            out_shape=jax.ShapeDtypeStruct((n, p_dim, ocp), jnp.float32),
            grid_spec=pltpu.PrefetchScalarGridSpec(
                num_scalar_prefetch=0,
                grid=(n, pt),
                in_specs=[
                    pl.BlockSpec((1, tp, ocp), lambda i, j: (i, j, 0)),
                    pl.BlockSpec((1, 2, ocp), lambda i, j: (i, 0, 0)),
                ],
                out_specs=pl.BlockSpec((1, tp, ocp), lambda i, j: (i, j, 0)),
            ),
            compiler_params=pltpu.CompilerParams(
                dimension_semantics=("parallel", "parallel")),
        )(y, stats_tot)

    out = out[:, :, :oc].reshape(n, oh, ow, oc)
    return jnp.transpose(out, (0, 3, 1, 2))                     # NCHW


def _reference(x_nchw, weight, bias, stride):
    """Pure-JAX reference (same bf16 conv operands, f32 accumulation)."""
    x_nhwc = jnp.transpose(x_nchw, (0, 2, 3, 1)).astype(jnp.bfloat16)
    xp = jnp.pad(x_nhwc, ((0, 0), (1, 1), (1, 1), (0, 0)), mode="reflect")
    w_hwio = jnp.transpose(weight, (2, 3, 1, 0)).astype(jnp.bfloat16)
    y = lax.conv_general_dilated(
        xp, w_hwio, window_strides=(stride, stride), padding="VALID",
        dimension_numbers=("NHWC", "HWIO", "NHWC"),
        preferred_element_type=jnp.float32)
    y = y + bias.reshape(1, 1, 1, -1).astype(jnp.float32)
    mean = jnp.mean(y, axis=(1, 2), keepdims=True)
    var = jnp.mean((y - mean) ** 2, axis=(1, 2), keepdims=True)
    yn = (y - mean) * lax.rsqrt(var + _EPS)
    out = jnp.maximum(yn, _LEAK * yn)
    return jnp.transpose(out, (0, 3, 1, 2))


if __name__ == "__main__":
    key = jax.random.PRNGKey(0)
    k_x, k_w, k_b = jax.random.split(key, 3)

    batch, in_channels, out_channels, spatial, stride = 2, 4, 8, 16, 2

    x = jax.random.normal(k_x, (batch, in_channels, spatial, spatial), jnp.float32)
    # Deterministic param init (shapes per nn.Conv2d(in, out, 4, stride, 1, bias=True)).
    fan_in = in_channels * 4 * 4
    bound = 1.0 / (fan_in ** 0.5)
    weight = jax.random.uniform(k_w, (out_channels, in_channels, 4, 4),
                                jnp.float32, -bound, bound)
    bias = jax.random.uniform(k_b, (out_channels,), jnp.float32, -bound, bound)

    ref = _reference(x, weight, bias, stride)

    # Fused single-pass path (used for all realistic Block shapes).
    out = jax.block_until_ready(block_forward(x, weight, bias, stride))
    assert out.shape == (batch, out_channels, spatial // stride, spatial // stride)
    assert bool(jnp.all(jnp.isfinite(out)))
    assert jnp.allclose(out, ref, atol=1e-3, rtol=1e-3), "fused path mismatch"

    # Streaming two-pass fallback (large-spatial path) exercised on same inputs.
    out2 = jax.block_until_ready(
        block_forward(x, weight, bias, stride, force_two_pass=True))
    assert jnp.allclose(out2, ref, atol=1e-3, rtol=1e-3), "two-pass path mismatch"

    print("KERNEL_OK")
</pallas_src>

<mosaic_0001>
module attributes {stable_mosaic.version = 11 : i64} {
  func.func @_kernel(%arg0: i32, %arg1: i32, %arg2: memref<1x64x64xbf16, #tpu.memory_space<vmem>>, %arg3: memref<64x128xbf16, #tpu.memory_space<vmem>>, %arg4: memref<1x128xf32, #tpu.memory_space<vmem>>, %arg5: memref<1x64x128xf32, #tpu.memory_space<vmem>>, %arg6: memref<64x128xf32, #tpu.memory_space<vmem>>) attributes {dimension_semantics = [#tpu.dimension_semantics<parallel>, #tpu.dimension_semantics<arbitrary>], iteration_bounds = array<i64: 2, 1>, scalar_prefetch = 0 : i64, scratch_operands = 1 : i64, tpu.core_type = #tpu.core_type<tc>, window_params = [{transform_indices = @transform_0, window_bounds = array<i64: 1, 64, 64>}, {transform_indices = @transform_1, window_bounds = array<i64: 64, 128>}, {pipeline_mode = #tpu.pipeline_mode<synchronous>, transform_indices = @transform_2, window_bounds = array<i64: 1, 128>}, {transform_indices = @transform_3, window_bounds = array<i64: 1, 64, 128>}]} {
    %c0_i32 = arith.constant 0 : i32
    %0 = arith.cmpi eq, %arg1, %c0_i32 : i32
    %1 = arith.extui %0 : i1 to i32
    %c0_i32_0 = arith.constant 0 : i32
    %2 = arith.cmpi ne, %1, %c0_i32_0 : i32
    scf.if %2 {
      %cst_11 = arith.constant 0.000000e+00 : f32
      %13 = vector.broadcast %cst_11 : f32 to vector<64x128xf32>
      %c0_12 = arith.constant 0 : index
      %c0_13 = arith.constant 0 : index
      %14 = vector.load %arg6[%c0_12, %c0_13] : memref<64x128xf32, #tpu.memory_space<vmem>>, vector<64x128xf32>
      tpu.vector_store %arg6[%c0_12, %c0_13], %13 {strides = array<i32>} : memref<64x128xf32, #tpu.memory_space<vmem>>, vector<64x128xf32>,
    } else {
    }
    %c0 = arith.constant 0 : index
    %c0_1 = arith.constant 0 : index
    %3 = vector.load %arg6[%c0, %c0_1] : memref<64x128xf32, #tpu.memory_space<vmem>>, vector<64x128xf32>
    %c0_2 = arith.constant 0 : index
    %c0_3 = arith.constant 0 : index
    %c0_4 = arith.constant 0 : index
    %4 = vector.load %arg2[%c0_2, %c0_3, %c0_4] : memref<1x64x64xbf16, #tpu.memory_space<vmem>>, vector<1x64x64xbf16>
    %5 = vector.shape_cast %4 : vector<1x64x64xbf16> to vector<64x64xbf16>
    %c0_5 = arith.constant 0 : index
    %c0_6 = arith.constant 0 : index
    %6 = vector.load %arg3[%c0_5, %c0_6] : memref<64x128xbf16, #tpu.memory_space<vmem>>, vector<64x128xbf16>
    %cst = arith.constant dense<0.000000e+00> : vector<64x128xf32>
    %7 = tpu.matmul %5, %6, %cst {dimension_numbers = #tpu.dot_dimension_numbers<[1], [0], [0], [1], [0, 0, 1, 1], [], []>} : vector<64x64xbf16>, vector<64x128xbf16>, vector<64x128xf32> -> vector<64x128xf32>
    %8 = arith.addf %3, %7 : vector<64x128xf32>
    %c0_7 = arith.constant 0 : index
    %c0_8 = arith.constant 0 : index
    %9 = vector.load %arg6[%c0_7, %c0_8] : memref<64x128xf32, #tpu.memory_space<vmem>>, vector<64x128xf32>
    tpu.vector_store %arg6[%c0_7, %c0_8], %8 {strides = array<i32>} : memref<64x128xf32, #tpu.memory_space<vmem>>, vector<64x128xf32>,
    %c0_i32_9 = arith.constant 0 : i32
    %10 = arith.cmpi eq, %arg1, %c0_i32_9 : i32
    %11 = arith.extui %10 : i1 to i32
    %c0_i32_10 = arith.constant 0 : i32
    %12 = arith.cmpi ne, %11, %c0_i32_10 : i32
    scf.if %12 {
      %c0_11 = arith.constant 0 : index
      %c0_12 = arith.constant 0 : index
      %13 = vector.load %arg6[%c0_11, %c0_12] : memref<64x128xf32, #tpu.memory_space<vmem>>, vector<64x128xf32>
      %c0_13 = arith.constant 0 : index
      %c0_14 = arith.constant 0 : index
      %14 = vector.load %arg4[%c0_13, %c0_14] : memref<1x128xf32, #tpu.memory_space<vmem>>, vector<1x128xf32>
      %15 = vector.broadcast %14 : vector<1x128xf32> to vector<64x128xf32>
      %16 = arith.addf %13, %15 : vector<64x128xf32>
      %cst_15 = arith.constant dense<0.000000e+00> : vector<128xf32>
      %17 = vector.multi_reduction <add>, %16, %cst_15 [0] : vector<64x128xf32> to vector<128xf32>
      %18 = vector.shape_cast %17 : vector<128xf32> to vector<1x128xf32>
      %cst_16 = arith.constant 1.562500e-02 : f32
      %19 = vector.broadcast %cst_16 : f32 to vector<1x128xf32>
      %20 = arith.mulf %18, %19 : vector<1x128xf32>
      %21 = arith.mulf %16, %16 : vector<64x128xf32>
      %cst_17 = arith.constant dense<0.000000e+00> : vector<128xf32>
      %22 = vector.multi_reduction <add>, %21, %cst_17 [0] : vector<64x128xf32> to vector<128xf32>
      %23 = vector.shape_cast %22 : vector<128xf32> to vector<1x128xf32>
      %cst_18 = arith.constant 1.562500e-02 : f32
      %24 = vector.broadcast %cst_18 : f32 to vector<1x128xf32>
      %25 = arith.mulf %23, %24 : vector<1x128xf32>
      %26 = arith.mulf %20, %20 : vector<1x128xf32>
      %27 = arith.subf %25, %26 : vector<1x128xf32>
      %cst_19 = arith.constant 0.000000e+00 : f32
      %28 = vector.broadcast %cst_19 : f32 to vector<1x128xf32>
      %29 = arith.maximumf %27, %28 : vector<1x128xf32>
      %30 = vector.broadcast %20 : vector<1x128xf32> to vector<64x128xf32>
      %31 = arith.subf %16, %30 : vector<64x128xf32>
      %cst_20 = arith.constant 9.99999974E-6 : f32
      %32 = vector.broadcast %cst_20 : f32 to vector<1x128xf32>
      %33 = arith.addf %29, %32 : vector<1x128xf32>
      %34 = math.rsqrt %33 : vector<1x128xf32>
      %35 = vector.broadcast %34 : vector<1x128xf32> to vector<64x128xf32>
      %36 = arith.mulf %31, %35 : vector<64x128xf32>
      %cst_21 = arith.constant 2.000000e-01 : f32
      %37 = vector.broadcast %cst_21 : f32 to vector<64x128xf32>
      %38 = arith.mulf %37, %36 : vector<64x128xf32>
      %39 = arith.maximumf %36, %38 : vector<64x128xf32>
      %c0_22 = arith.constant 0 : index
      %c0_23 = arith.constant 0 : index
      %c0_24 = arith.constant 0 : index
      %40 = vector.load %arg5[%c0_22, %c0_23, %c0_24] : memref<1x64x128xf32, #tpu.memory_space<vmem>>, vector<1x64x128xf32>
      %41 = vector.shape_cast %40 : vector<1x64x128xf32> to vector<64x128xf32>
      %42 = vector.shape_cast %39 : vector<64x128xf32> to vector<1x64x128xf32>
      tpu.vector_store %arg5[%c0_22, %c0_23, %c0_24], %42 {strides = array<i32>} : memref<1x64x128xf32, #tpu.memory_space<vmem>>, vector<1x64x128xf32>,
    } else {
    }
    return
  }
  func.func @transform_0(%arg0: i32, %arg1: i32) -> (i32, i32, i32) {
    %c0_i32 = arith.constant 0 : i32
    %c0_i32_0 = arith.constant 0 : i32
    return %arg0, %c0_i32, %arg1 : i32, i32, i32
  }
  func.func @transform_1(%arg0: i32, %arg1: i32) -> (i32, i32) {
    %c0_i32 = arith.constant 0 : i32
    %c0_i32_0 = arith.constant 0 : i32
    return %arg1, %c0_i32 : i32, i32
  }
  func.func @transform_2(%arg0: i32, %arg1: i32) -> (i32, i32) {
    %c0_i32 = arith.constant 0 : i32
    %c0_i32_0 = arith.constant 0 : i32
    %c0_i32_1 = arith.constant 0 : i32
    return %c0_i32, %c0_i32_0 : i32, i32
  }
  func.func @transform_3(%arg0: i32, %arg1: i32) -> (i32, i32, i32) {
    %c0_i32 = arith.constant 0 : i32
    %c0_i32_0 = arith.constant 0 : i32
    %c0_i32_1 = arith.constant 0 : i32
    return %arg0, %c0_i32, %c0_i32_0 : i32, i32, i32
  }
}

</mosaic_0001>

<llo_original>
// kernel: tpu_custom_call.1
$region0: #{tpu_custom_call.1}
  #allocation0 [shape = 'u32[]', space=smem, size = 0x4, offset = 0x4, fixed_abs, tag = 'smem constant byte address 0x4 - core index']
  #allocation1 [shape = 'u32[144,128]{1,0:T(1,128)}', space=vmem, size = 0x12000, scoped, tag = 'internal scratch']
  #allocation2 [shape = 'f32[64,128]{1,0:T(8,128)}', space=vmem, size = 0x8000, scoped, tag = 'scratch operand']
  %s0 = inlined_call_operand.hbm [shape: bf16[2,64,64], index: 0, kind: input, shape index: {}]
  %s1 = inlined_call_operand.hbm [shape: bf16[64,128], index: 1, kind: input, shape index: {}]
  %s2 = inlined_call_operand.vmem [shape: f32[1,128], index: 2, kind: input, shape index: {}]
  %s3 = inlined_call_operand.hbm [shape: f32[2,64,128], index: 3, kind: output, shape index: {}]
  %s4 = sld [smem:[#allocation0]]
  $region61: #{tpu_custom_call.1} parent=0
    _
  %s6 = ssub.s32 1, %s4
  %s7 = scalar_select 0, %s6, %s4
  $region1: #{tpu_custom_call.1} parent=0
    #allocation3 [shape = 'u8[32768]{0}', space=vmem, size = 0x8000, scoped, tag = 'input window, operand 0']
    #allocation4 [shape = 's32[2]{0}', space=sflag, size = 0x8, scoped, tag = 'scoped memory for tpu_custom_call.1']
    #allocation5 [shape = 's32[2]{0}', space=sflag, size = 0x8, scoped, tag = 'scoped memory for tpu_custom_call.1']
    #allocation6 [shape = 'u8[16384]{0}', space=vmem, size = 0x4000, scoped, tag = 'input window, operand 1, single buffered']
    #allocation7 [shape = 's32[1]{0}', space=sflag, size = 0x4, scoped, tag = 'scoped memory for tpu_custom_call.1']
    #allocation8 [shape = 'u8[65536]{0}', space=vmem, size = 0x10000, scoped, tag = 'output window, operand 0']
    %8 = vsyncpa [#allocation4], 0
    %s9 = scalar_lea.sflag [#allocation4], 1
    %10 = vsyncpa %s9, 0
    %11 = vsyncpa [#allocation7], 0
    %12 = vsyncpa [#allocation5], 0
    %s13 = scalar_lea.sflag [#allocation5], 1
    %14 = vsyncpa %s13, 0
    loop: start=0, step=1, limit=4
    $region2: #{tpu_custom_call.1} parent=1 // loop_pre_header
      _
    $region3: #{tpu_custom_call.1} parent=1 // loop_header
      %s16 = sphi 0, %s20
      %p17 = scmp.ge.s32.totalorder %s16, 4
      %s23 = sphi 0, %s35
      %s24 = sphi 0, %s31
      %s25 = sphi 0, %s23
      %s26 = sphi 0, %s24
      %s27 = sphi 0, %s25
      %s28 = sphi 0, %s26
      %s40 = sphi 0, %s42
      %s43 = sphi 0, %s40
      %s44 = sphi 0, %s43
      %s60 = sphi 0, %s44
      %s66 = sphi 0, %s68
      %s69 = sphi 0, %s66
      %s70 = sphi 0, %s69
      %s86 = sphi 0, %s70
      %s90 = sphi 0, %s90
      %s92 = sphi 0, %s90
      %s93 = sphi 0, %s92
      %s107 = sphi 0, %s93
      %s113 = sphi 0, %s115
      %s116 = sphi 0, %s113
      %s117 = sphi 0, %s116
      %s133 = sphi 0, %s117
    $region4: #{tpu_custom_call.1} parent=1 // loop_header_branch
      %19 = sbr.rel (%p17) target = $region8
    $region5: #{tpu_custom_call.1} parent=1 // loop_body
      %s21 = ssub.s32 %s16, 1
      %s22 = ssub.s32 %s16, 2
      %s29 = sadd.s32 1, %s24
      %p30 = scmp.ge.s32.totalorder %s29, 1
      %s31 = scalar_select %p30, 0, %s29
      %s32 = sadd.s32 1, %s23
      %s33 = scalar_select %p30, %s32, %s23
      %p34 = scmp.ge.s32.totalorder %s33, 2
      %s35 = scalar_select %p34, 0, %s33
      %s36 = ssub.s32 %s23, %s35
      %s37 = ssub.s32 %s24, %s31
      %s38 = sor.u32 %s36, %s37
      %p39 = scmp.eq.s32.totalorder %s38, 0
      %s41 = sadd.s32 %s40, 1
      %s42 = scalar_select %p39, %s40, %s41
      %p45 = pneg %p39
      %p46 = scmp.eq.s32.totalorder %s16, 1
      %p47 = por %p45, %p46
      %p48 = scmp.ne.s32.totalorder %s40, %s43
      %p49 = scmp.eq.s32.totalorder %s16, 0
      %p50 = por %p48, %p49
      %p51 = scmp.ne.s32.totalorder %s40, %s43
      %p52 = scmp.eq.s32.totalorder %s21, 1
      %p53 = por %p51, %p52
      %p54 = scmp.ne.s32.totalorder %s43, %s44
      %p55 = scmp.eq.s32.totalorder %s21, 0
      %p56 = por %p54, %p55
      %p57 = scmp.ne.s32.totalorder %s43, %s44
      %p58 = scmp.eq.s32.totalorder %s22, 1
      %p59 = por %p57, %p58
      %p61 = scmp.ne.s32.totalorder %s44, %s60
      %p62 = scmp.eq.s32.totalorder %s22, 0
      %p63 = por %p61, %p62
      %s64 = ssub.s32 %s24, %s31
      %p65 = scmp.eq.s32.totalorder %s64, 0
      %s67 = sadd.s32 %s66, 1
      %s68 = scalar_select %p65, %s66, %s67
      %p71 = pneg %p65
      %p72 = scmp.eq.s32.totalorder %s16, 1
      %p73 = por %p71, %p72
      %p74 = scmp.ne.s32.totalorder %s66, %s69
      %p75 = scmp.eq.s32.totalorder %s16, 0
      %p76 = por %p74, %p75
      %p77 = scmp.ne.s32.totalorder %s66, %s69
      %p78 = scmp.eq.s32.totalorder %s21, 1
      %p79 = por %p77, %p78
      %p80 = scmp.ne.s32.totalorder %s69, %s70
      %p81 = scmp.eq.s32.totalorder %s21, 0
      %p82 = por %p80, %p81
      %p83 = scmp.ne.s32.totalorder %s69, %s70
      %p84 = scmp.eq.s32.totalorder %s22, 1
      %p85 = por %p83, %p84
      %p87 = scmp.ne.s32.totalorder %s70, %s86
      %p88 = scmp.eq.s32.totalorder %s22, 0
      %p89 = por %p87, %p88
      %s91 = sadd.s32 %s90, 1
      %p94 = scmp.eq.s32.totalorder %s16, 1
      %p95 = scmp.ne.s32.totalorder %s90, %s92
      %p96 = scmp.eq.s32.totalorder %s16, 0
      %p97 = por %p95, %p96
      %p98 = scmp.ne.s32.totalorder %s90, %s92
      %p99 = scmp.eq.s32.totalorder %s21, 1
      %p100 = por %p98, %p99
      %p101 = scmp.ne.s32.totalorder %s92, %s93
      %p102 = scmp.eq.s32.totalorder %s21, 0
      %p103 = por %p101, %p102
      %p104 = scmp.ne.s32.totalorder %s92, %s93
      %p105 = scmp.eq.s32.totalorder %s22, 1
      %p106 = por %p104, %p105
      %p108 = scmp.ne.s32.totalorder %s93, %s107
      %p109 = scmp.eq.s32.totalorder %s22, 0
      %p110 = por %p108, %p109
      %s111 = ssub.s32 %s23, %s35
      %p112 = scmp.eq.s32.totalorder %s111, 0
      %s114 = sadd.s32 %s113, 1
      %s115 = scalar_select %p112, %s113, %s114
      %p118 = pneg %p112
      %p119 = scmp.eq.s32.totalorder %s16, 1
      %p120 = por %p118, %p119
      %p121 = scmp.ne.s32.totalorder %s113, %s116
      %p122 = scmp.eq.s32.totalorder %s16, 0
      %p123 = por %p121, %p122
      %p124 = scmp.ne.s32.totalorder %s113, %s116
      %p125 = scmp.eq.s32.totalorder %s21, 1
      %p126 = por %p124, %p125
      %p127 = scmp.ne.s32.totalorder %s116, %s117
      %p128 = scmp.eq.s32.totalorder %s21, 0
      %p129 = por %p127, %p128
      %p130 = scmp.ne.s32.totalorder %s116, %s117
      %p131 = scmp.eq.s32.totalorder %s22, 1
      %p132 = por %p130, %p131
      %p134 = scmp.ne.s32.totalorder %s117, %s133
      %p135 = scmp.eq.s32.totalorder %s22, 0
      %p136 = por %p134, %p135
      %p137 = scmp.le.s32.totalorder 1, %s16
      %p138 = scmp.lt.s32.totalorder %s16, 3
      %p139 = pnand %p137, %p138
      %p140 = pneg %p139
      // Predicated region
      $region9: #{tpu_custom_call.1} parent=5 // pred_check
        _
      $region10: #{tpu_custom_call.1} parent=5 // pred_check_branch
        %142 = sbr.rel (%p139) target = $region12
      $region11: #{tpu_custom_call.1} parent=5 // pred_region
        %s143 = ssub.s32 %s16, 1
        // Predicated region
        $region13: #{tpu_custom_call.1} parent=11 // pred_check
          %p144 = pneg %p82
        $region14: #{tpu_custom_call.1} parent=11 // pred_check_branch
          %146 = sbr.rel (%p144) target = $region16
        $region15: #{tpu_custom_call.1} parent=11 // pred_region
          %s147 = smul.u32 8, %s26
          %s149 = ssub.s32 512, 512
          %150 = vsyncadd [#allocation7], %s149
          %s151 = smul.addr %s147, 64
          %s152 = scalar_lea.hbm %s1, %s151
          %s153 = sshll.u32 [#allocation6], 4
          %s154 = int_to_ptr.vmem [resolvable:$true] %s153
          %159 = dma.hbm_to_vmem [thread:$0]  %s152, 512, %s154, [#allocation7], 64, 64, 4
        $region16: #{tpu_custom_call.1} parent=11 // pred_fallthru
          _
        // Predicated region
        $region17: #{tpu_custom_call.1} parent=11 // pred_check
          %p160 = pneg %p103
        $region18: #{tpu_custom_call.1} parent=11 // pred_check_branch
          %162 = sbr.rel (%p160) target = $region20
        $region19: #{tpu_custom_call.1} parent=11 // pred_region
          _
        $region20: #{tpu_custom_call.1} parent=11 // pred_fallthru
          _
      $region12: #{tpu_custom_call.1} parent=5 // pred_fallthru
        _
      %p163 = scmp.lt.s32.totalorder %s16, 2
      // Predicated region
      $region21: #{tpu_custom_call.1} parent=5 // pred_check
        %p164 = pneg %p163
      $region22: #{tpu_custom_call.1} parent=5 // pred_check_branch
        %166 = sbr.rel (%p164) target = $region24
      $region23: #{tpu_custom_call.1} parent=5 // pred_region
        // Predicated region
        $region25: #{tpu_custom_call.1} parent=23 // pred_check
          %p167 = pneg %p50
        $region26: #{tpu_custom_call.1} parent=23 // pred_check_branch
          %169 = sbr.rel (%p167) target = $region28
        $region27: #{tpu_custom_call.1} parent=23 // pred_region
          %s170 = sand.u32 %s40, 1
          %s171 = scalar_lea.sflag [#allocation4], %s170
          %s172 = sand.u32 %s40, 1
          %s173 = smul.addr %s172, 32
          %s174 = scalar_lea.vmem [#allocation3], %s173
          %s176 = ssub.s32 512, 512
          %177 = vsyncadd %s171, %s176
          %s178 = smul.addr %s23, 8
          %s179 = sadd.s32 %s24, %s178
          %s180 = smul.addr %s179, 64
          %s181 = scalar_lea.hbm %s0, %s180
          %s182 = sshll.u32 %s174, 4
          %s183 = int_to_ptr.vmem [resolvable:$true] %s182
          %188 = dma.hbm_to_vmem [thread:$0]  %s181, 512, %s183, %s171, 64, 64, 4
        $region28: #{tpu_custom_call.1} parent=23 // pred_fallthru
          _
      $region24: #{tpu_custom_call.1} parent=5 // pred_fallthru
        _
      %p189 = scmp.le.s32.totalorder 1, %s16
      %p190 = scmp.lt.s32.totalorder %s16, 3
      %p191 = pnand %p189, %p190
      %p192 = pneg %p191
      // Predicated region
      $region29: #{tpu_custom_call.1} parent=5 // pred_check
        _
      $region30: #{tpu_custom_call.1} parent=5 // pred_check_branch
        %194 = sbr.rel (%p191) target = $region32
      $region31: #{tpu_custom_call.1} parent=5 // pred_region
        %s195 = ssub.s32 %s16, 1
        %s196 = sand.u32 %s43, 1
        %s197 = scalar_lea.sflag [#allocation4], %s196
        %s198 = sand.u32 %s43, 1
        %s199 = smul.addr %s198, 32
        %s200 = scalar_lea.vmem [#allocation3], %s199
        // Predicated region
        $region33: #{tpu_custom_call.1} parent=31 // pred_check
          %p201 = pneg %p56
        $region34: #{tpu_custom_call.1} parent=31 // pred_check_branch
          %203 = sbr.rel (%p201) target = $region36
        $region35: #{tpu_custom_call.1} parent=31 // pred_region
          %204 = dma.done %s197, 512
        $region36: #{tpu_custom_call.1} parent=31 // pred_fallthru
          _
        // Predicated region
        $region37: #{tpu_custom_call.1} parent=31 // pred_check
          %p205 = pneg %p82
        $region38: #{tpu_custom_call.1} parent=31 // pred_check_branch
          %207 = sbr.rel (%p205) target = $region40
        $region39: #{tpu_custom_call.1} parent=31 // pred_region
          %208 = dma.done [#allocation7], 512
        $region40: #{tpu_custom_call.1} parent=31 // pred_fallthru
          _
        %s209 = sand.u32 %s43, 1
        %s210 = scalar_lea.sflag [#allocation4], %s209
        %s211 = sand.u32 %s43, 1
        %s212 = smul.addr %s211, 32
        %s213 = scalar_lea.vmem [#allocation3], %s212
        %p214 = pneg %p56
        %p215 = pneg %p53
        %p216 = pneg %p82
        %p217 = pneg %p79
        %p218 = pneg %p103
        %p219 = pneg %p100
        %p220 = pneg %p129
        %p221 = pneg %p126
        %s222 = sand.u32 %s116, 1
        %s223 = scalar_lea.sflag [#allocation5], %s222
        %s224 = sand.u32 %s116, 1
        %s225 = smul.addr %s224, 64
        %s226 = scalar_lea.vmem [#allocation8], %s225
        %s227 = smul.u32 8, %s26
        %p229 = scmp.eq.s32.totalorder %s26, 0
        // Predicated region
        $region41: #{tpu_custom_call.1} parent=31 // pred_check
          %p230 = pneg %p229
        $region42: #{tpu_custom_call.1} parent=31 // pred_check_branch
          %232 = sbr.rel (%p230) target = $region44
        $region43: #{tpu_custom_call.1} parent=31 // pred_region
          %233 = vst [vmem:[#allocation2] sm:$0xff] 0.0
          %234 = vst [vmem:[#allocation2 + $0x8] sm:$0xff] 0.0
          %235 = vst [vmem:[#allocation2 + $0x10] sm:$0xff] 0.0
          %236 = vst [vmem:[#allocation2 + $0x18] sm:$0xff] 0.0
          %237 = vst [vmem:[#allocation2 + $0x20] sm:$0xff] 0.0
          %238 = vst [vmem:[#allocation2 + $0x28] sm:$0xff] 0.0
          %239 = vst [vmem:[#allocation2 + $0x30] sm:$0xff] 0.0
          %240 = vst [vmem:[#allocation2 + $0x38] sm:$0xff] 0.0
        $region44: #{tpu_custom_call.1} parent=31 // pred_fallthru
          _
        %v241 = vld [vmem:[#allocation2] sm:$0xff]
        %v242 = vld [vmem:[#allocation2 + $0x8] sm:$0xff]
        %v243 = vld [vmem:[#allocation2 + $0x10] sm:$0xff]
        %v244 = vld [vmem:[#allocation2 + $0x18] sm:$0xff]
        %v245 = vld [vmem:[#allocation2 + $0x20] sm:$0xff]
        %v246 = vld [vmem:[#allocation2 + $0x28] sm:$0xff]
        %v247 = vld [vmem:[#allocation2 + $0x30] sm:$0xff]
        %v248 = vld [vmem:[#allocation2 + $0x38] sm:$0xff]
        %v249 = vld [vmem:[%s200] sm:$0xf]
        %v250 = vld [vmem:[%s200 + $0x4] sm:$0xf]
        %v251 = vld [vmem:[%s200 + $0x8] sm:$0xf]
        %v252 = vld [vmem:[%s200 + $0xc] sm:$0xf]
        %v253 = vld [vmem:[%s200 + $0x10] sm:$0xf]
        %v254 = vld [vmem:[%s200 + $0x14] sm:$0xf]
        %v255 = vld [vmem:[%s200 + $0x18] sm:$0xf]
        %v256 = vld [vmem:[%s200 + $0x1c] sm:$0xf]
        %v257 = vld [vmem:[#allocation6] sm:$0xf]
        %v258 = vld [vmem:[#allocation6 + $0x4] sm:$0xf]
        %v259 = vld [vmem:[#allocation6 + $0x8] sm:$0xf]
        %v260 = vld [vmem:[#allocation6 + $0xc] sm:$0xf]
        %v261 = vld [vmem:[#allocation6 + $0x10] sm:$0xf]
        %v262 = vld [vmem:[#allocation6 + $0x14] sm:$0xf]
        %v263 = vld [vmem:[#allocation6 + $0x18] sm:$0xf]
        %v264 = vld [vmem:[#allocation6 + $0x1c] sm:$0xf]
        %v273 = vunpack.c.l.b16 %v249
        %v274 = vunpack.c.l.b16 %v250
        %v275 = vunpack.c.l.b16 %v251
        %v276 = vunpack.c.l.b16 %v252
        %v277 = vunpack.c.l.b16 %v253
        %v278 = vunpack.c.l.b16 %v254
        %v279 = vunpack.c.l.b16 %v255
        %v280 = vunpack.c.l.b16 %v256
        %v281 = vpack.c.b16 %v274, %v273
        %v282 = vpack.c.b16 %v276, %v275
        %v283 = vpack.c.b16 %v278, %v277
        %v284 = vpack.c.b16 %v280, %v279
        %v293 = vunpack.c.l.b16 %v257
        %v294 = vunpack.c.l.b16 %v258
        %v295 = vunpack.c.l.b16 %v259
        %v296 = vunpack.c.l.b16 %v260
        %v297 = vunpack.c.l.b16 %v261
        %v298 = vunpack.c.l.b16 %v262
        %v299 = vunpack.c.l.b16 %v263
        %v300 = vunpack.c.l.b16 %v264
        %v301 = vpack.c.b16 %v294, %v293
        %v302 = vpack.c.b16 %v296, %v295
        %v303 = vpack.c.b16 %v298, %v297
        %v304 = vpack.c.b16 %v300, %v299
        %vm309 = vcmask 523264
        %v311 = vsel %vm309, %v281, 0
        %v314 = vsel %vm309, %v282, 0
        %v317 = vsel %vm309, %v283, 0
        %v320 = vsel %vm309, %v284, 0
        %322 = vmatprep.subr.bf16.mxu0 0
        %323 = vmatpush1.bf16.msra.mxu0 %v301
        %324 = vmatprep.subr.bf16.mxu0 0
        %325 = vmatpush1.bf16.msra.mxu0 %v302
        %326 = vmatprep.subr.bf16.mxu0 0
        %327 = vmatpush1.bf16.msra.mxu0 %v303
        %328 = vmatprep.subr.bf16.mxu0 0
        %329 = vmatpush1.bf16.msra.mxu0 %v304
        %330 = vmatprep.subr.bf16.mxu0 0
        %331 = vmatpush1.bf16.msra.mxu0 0
        %332 = vmatprep.subr.bf16.mxu0 0
        %333 = vmatpush1.bf16.msra.mxu0 0
        %334 = vmatprep.subr.bf16.mxu0 0
        %335 = vmatpush1.bf16.msra.mxu0 0
        %336 = vmatprep.subr.bf16.mxu0 0
        %337 = vmatpush1.bf16.msra.mxu0 0
        %338 = vmatprep.subr.bf16.mxu0 0
        %339 = vmatpush1.bf16.msra.mxu0 0
        %340 = vmatprep.subr.bf16.mxu0 0
        %341 = vmatpush1.bf16.msra.mxu0 0
        %342 = vmatprep.subr.bf16.mxu0 0
        %343 = vmatpush1.bf16.msra.mxu0 0
        %344 = vmatprep.subr.bf16.mxu0 0
        %345 = vmatpush1.bf16.msra.mxu0 0
        %346 = vmatprep.subr.bf16.mxu0 0
        %347 = vmatpush1.bf16.msra.mxu0 0
        %348 = vmatprep.subr.bf16.mxu0 0
        %349 = vmatpush1.bf16.msra.mxu0 0
        %350 = vmatprep.subr.bf16.mxu0 0
        %351 = vmatpush1.bf16.msra.mxu0 0
        %352 = vmatprep.subr.bf16.mxu0 0
        %353 = vmatpush1.bf16.msra.mxu0 0
        %354 = vmatprep.mubr.bf16.mxu0 0
        %355 = vmatmul.mubr.bf16.gmra.mrb[0].mxu0 %v311
        %v356 = vpop.f32.mrb[0].mxu0
        %v357 = vadd.f32 0.0, %v356
        %v358 = vpop.f32.mrb[0].mxu0
        %v359 = vpop.f32.mrb[0].mxu0
        %v360 = vadd.f32 0.0, %v359
        %v361 = vpop.f32.mrb[0].mxu0
        %362 = vmatprep.mubr.bf16.mxu0 0
        %363 = vmatmul.mubr.bf16.gmra.mrb[0].mxu0 %v314
        %v364 = vpop.f32.mrb[0].mxu0
        %v365 = vadd.f32 0.0, %v364
        %v366 = vpop.f32.mrb[0].mxu0
        %v367 = vpop.f32.mrb[0].mxu0
        %v368 = vadd.f32 0.0, %v367
        %v369 = vpop.f32.mrb[0].mxu0
        %370 = vmatprep.mubr.bf16.mxu0 0
        %371 = vmatmul.mubr.bf16.gmra.mrb[0].mxu0 %v317
        %v372 = vpop.f32.mrb[0].mxu0
        %v373 = vadd.f32 0.0, %v372
        %v374 = vpop.f32.mrb[0].mxu0
        %v375 = vpop.f32.mrb[0].mxu0
        %v376 = vadd.f32 0.0, %v375
        %v377 = vpop.f32.mrb[0].mxu0
        %378 = vmatprep.mubr.bf16.mxu0 0
        %379 = vmatmul.mubr.bf16.gmra.mrb[0].mxu0 %v320
        %v380 = vpop.f32.mrb[0].mxu0
        %v381 = vadd.f32 0.0, %v380
        %v382 = vpop.f32.mrb[0].mxu0
        %v383 = vpop.f32.mrb[0].mxu0
        %v384 = vadd.f32 0.0, %v383
        %v385 = vpop.f32.mrb[0].mxu0
        %386 = vdwg.mxu0
        %v387 = vadd.f32 %v241, %v357
        %v388 = vadd.f32 %v242, %v360
        %v389 = vadd.f32 %v243, %v365
        %v390 = vadd.f32 %v244, %v368
        %v391 = vadd.f32 %v245, %v373
        %v392 = vadd.f32 %v246, %v376
        %v393 = vadd.f32 %v247, %v381
        %v394 = vadd.f32 %v248, %v384
        %395 = vst [vmem:[#allocation2] sm:$0xff] %v387
        %396 = vst [vmem:[#allocation2 + $0x8] sm:$0xff] %v388
        %397 = vst [vmem:[#allocation2 + $0x10] sm:$0xff] %v389
        %398 = vst [vmem:[#allocation2 + $0x18] sm:$0xff] %v390
        %399 = vst [vmem:[#allocation2 + $0x20] sm:$0xff] %v391
        %400 = vst [vmem:[#allocation2 + $0x28] sm:$0xff] %v392
        %401 = vst [vmem:[#allocation2 + $0x30] sm:$0xff] %v393
        %402 = vst [vmem:[#allocation2 + $0x38] sm:$0xff] %v394
        // Predicated region
        $region45: #{tpu_custom_call.1} parent=31 // pred_check
          %p403 = pneg %p229
        $region46: #{tpu_custom_call.1} parent=31 // pred_check_branch
          %405 = sbr.rel (%p403) target = $region48
        $region47: #{tpu_custom_call.1} parent=31 // pred_region
          %v406 = vld [vmem:[#allocation2] sm:$0xff]
          %v407 = vld [vmem:[#allocation2 + $0x8] sm:$0xff]
          %v408 = vld [vmem:[#allocation2 + $0x10] sm:$0xff]
          %v409 = vld [vmem:[#allocation2 + $0x18] sm:$0xff]
          %v410 = vld [vmem:[#allocation2 + $0x20] sm:$0xff]
          %v411 = vld [vmem:[#allocation2 + $0x28] sm:$0xff]
          %v412 = vld [vmem:[#allocation2 + $0x30] sm:$0xff]
          %v413 = vld [vmem:[#allocation2 + $0x38] sm:$0xff]
          %v414 = vld [vmem:[%s2] sm:$0x1]
          %v416 = vlaneseq
          %v417 = vshrl.u32 %v416, 7
          %v418 = vsub.s32 0, %v417
          %v419 = vrot.slane %v414, %v418
          %v421 = vadd.f32 %v406, %v419
          %v422 = vadd.f32 %v407, %v419
          %v423 = vadd.f32 %v408, %v419
          %v424 = vadd.f32 %v409, %v419
          %v425 = vadd.f32 %v410, %v419
          %v426 = vadd.f32 %v411, %v419
          %v427 = vadd.f32 %v412, %v419
          %v428 = vadd.f32 %v413, %v419
          %v429 = vadd.f32 %v421, %v422
          %v430 = vadd.f32 %v429, %v423
          %v431 = vadd.f32 %v430, %v424
          %v432 = vadd.f32 %v431, %v425
          %v433 = vadd.f32 %v432, %v426
          %v434 = vadd.f32 %v433, %v427
          %v435 = vadd.f32 %v434, %v428
          %v436 = vrot.slane %v435, 4
          %v437 = vadd.f32 %v435, %v436
          %v438 = vrot.slane %v437, 2
          %v439 = vadd.f32 %v437, %v438
          %v440 = vrot.slane %v439, 1
          %v441 = vadd.f32 %v439, %v440
          %v442 = vmul.f32 %v441, 0.015625
          %v443 = vmul.f32 %v421, %v421
          %v444 = vmul.f32 %v422, %v422
          %v445 = vmul.f32 %v423, %v423
          %v446 = vmul.f32 %v424, %v424
          %v447 = vmul.f32 %v425, %v425
          %v448 = vmul.f32 %v426, %v426
          %v449 = vmul.f32 %v427, %v427
          %v450 = vmul.f32 %v428, %v428
          %v451 = vadd.f32 %v443, %v444
          %v452 = vadd.f32 %v451, %v445
          %v453 = vadd.f32 %v452, %v446
          %v454 = vadd.f32 %v453, %v447
          %v455 = vadd.f32 %v454, %v448
          %v456 = vadd.f32 %v455, %v449
          %v457 = vadd.f32 %v456, %v450
          %v458 = vrot.slane %v457, 4
          %v459 = vadd.f32 %v457, %v458
          %v460 = vrot.slane %v459, 2
          %v461 = vadd.f32 %v459, %v460
          %v462 = vrot.slane %v461, 1
          %v463 = vadd.f32 %v461, %v462
          %v464 = vmul.f32 %v463, 0.015625
          %v465 = vmul.f32 %v442, %v442
          %v466 = vsub.f32 %v464, %v465
          %v467 = vmax.f32 %v466, 0.0
          %v468 = vsub.f32 %v421, %v442
          %v469 = vsub.f32 %v422, %v442
          %v470 = vsub.f32 %v423, %v442
          %v471 = vsub.f32 %v424, %v442
          %v472 = vsub.f32 %v425, %v442
          %v473 = vsub.f32 %v426, %v442
          %v474 = vsub.f32 %v427, %v442
          %v475 = vsub.f32 %v428, %v442
          %v476 = vadd.f32 %v467, 1e-05
          %v477 = vrsqrt.pop %v476
          %v478 = vmul.f32 %v468, %v477
          %v479 = vmul.f32 %v469, %v477
          %v480 = vmul.f32 %v470, %v477
          %v481 = vmul.f32 %v471, %v477
          %v482 = vmul.f32 %v472, %v477
          %v483 = vmul.f32 %v473, %v477
          %v484 = vmul.f32 %v474, %v477
          %v485 = vmul.f32 %v475, %v477
          %v486 = vmul.f32 %v478, 0.2
          %v487 = vmul.f32 %v479, 0.2
          %v488 = vmul.f32 %v480, 0.2
          %v489 = vmul.f32 %v481, 0.2
          %v490 = vmul.f32 %v482, 0.2
          %v491 = vmul.f32 %v483, 0.2
          %v492 = vmul.f32 %v484, 0.2
          %v493 = vmul.f32 %v485, 0.2
          %v494 = vmax.f32 %v478, %v486
          %v495 = vmax.f32 %v479, %v487
          %v496 = vmax.f32 %v480, %v488
          %v497 = vmax.f32 %v481, %v489
          %v498 = vmax.f32 %v482, %v490
          %v499 = vmax.f32 %v483, %v491
          %v500 = vmax.f32 %v484, %v492
          %v501 = vmax.f32 %v485, %v493
          %502 = vst [vmem:[%s226] sm:$0xff] %v494
          %503 = vst [vmem:[%s226 + $0x8] sm:$0xff] %v495
          %504 = vst [vmem:[%s226 + $0x10] sm:$0xff] %v496
          %505 = vst [vmem:[%s226 + $0x18] sm:$0xff] %v497
          %506 = vst [vmem:[%s226 + $0x20] sm:$0xff] %v498
          %507 = vst [vmem:[%s226 + $0x28] sm:$0xff] %v499
          %508 = vst [vmem:[%s226 + $0x30] sm:$0xff] %v500
          %509 = vst [vmem:[%s226 + $0x38] sm:$0xff] %v501
        $region48: #{tpu_custom_call.1} parent=31 // pred_fallthru
          _
        %s510 = sand.u32 %s116, 1
        %s511 = scalar_lea.sflag [#allocation5], %s510
        %s512 = sand.u32 %s116, 1
        %s513 = smul.addr %s512, 64
        %s514 = scalar_lea.vmem [#allocation8], %s513
        // Predicated region
        $region49: #{tpu_custom_call.1} parent=31 // pred_check
          %p515 = pneg %p126
        $region50: #{tpu_custom_call.1} parent=31 // pred_check_branch
          %517 = sbr.rel (%p515) target = $region52
        $region51: #{tpu_custom_call.1} parent=31 // pred_region
          %s519 = ssub.s32 1024, 1024
          %520 = vsyncadd %s511, %s519
          %s521 = smul.addr %s25, 8
          %s522 = smul.addr %s521, 128
          %s523 = scalar_lea.hbm %s3, %s522
          %s524 = sshll.u32 %s514, 4
          %s525 = int_to_ptr.vmem [resolvable:$true] %s524
          %530 = dma.vmem_to_hbm [thread:$0]  %s525, 1024, %s523, %s511, 128, 128, 8
        $region52: #{tpu_custom_call.1} parent=31 // pred_fallthru
          _
      $region32: #{tpu_custom_call.1} parent=5 // pred_fallthru
        _
      %p531 = scmp.le.s32.totalorder 2, %s16
      // Predicated region
      $region53: #{tpu_custom_call.1} parent=5 // pred_check
        %p532 = pneg %p531
      $region54: #{tpu_custom_call.1} parent=5 // pred_check_branch
        %534 = sbr.rel (%p532) target = $region56
      $region55: #{tpu_custom_call.1} parent=5 // pred_region
        %s535 = ssub.s32 %s16, 2
        // Predicated region
        $region57: #{tpu_custom_call.1} parent=55 // pred_check
          %p536 = pneg %p132
        $region58: #{tpu_custom_call.1} parent=55 // pred_check_branch
          %538 = sbr.rel (%p536) target = $region60
        $region59: #{tpu_custom_call.1} parent=55 // pred_region
          %s539 = sand.u32 %s117, 1
          %s540 = scalar_lea.sflag [#allocation5], %s539
          %s541 = sand.u32 %s117, 1
          %s542 = smul.addr %s541, 64
          %s543 = scalar_lea.vmem [#allocation8], %s542
          %544 = dma.done %s540, 1024
        $region60: #{tpu_custom_call.1} parent=55 // pred_fallthru
          _
      $region56: #{tpu_custom_call.1} parent=5 // pred_fallthru
        _
    $region6: #{tpu_custom_call.1} parent=1 // loop_footer
      %s20 = sadd.s32 1, %s16
    $region7: #{tpu_custom_call.1} parent=1 // loop_footer_branch
      %15 = sbr.rel target = $region3
    $region8: #{tpu_custom_call.1} parent=1 // loop_exit
      _
    %545 = vsyncpa [#allocation4], 1
    %s546 = scalar_lea.sflag [#allocation4], 1
    %547 = vsyncpa %s546, 1
    %548 = vsyncpa [#allocation7], 1
    %549 = vsyncpa [#allocation5], 1
    %s550 = scalar_lea.sflag [#allocation5], 1
    %551 = vsyncpa %s550, 1

</llo_original>
